<compile_context>
chip_gen: v7x
topology: tpu7x:2x2x1
jax: 0.10.0
libtpu: 0.0.40
codegen_flags: <defaults>
</compile_context>

<pallas_src>
import jax
import jax.numpy as jnp
from jax.experimental import pallas as pl
from jax.experimental.pallas import tpu as pltpu


_LANES = 128
_MIN_PALLAS_BYTES = 128 * 1024  # below ~128 KiB, fused jnp beats a custom call


def _round_up(a: int, b: int) -> int:
    return ((a + b - 1) // b) * b


def _vmem_budget_bytes() -> int:
    """Per-generation VMEM cap (leave ~25% headroom for Mosaic scratch)."""
    try:
        cap = int(pltpu.get_tpu_info().vmem_capacity_bytes)
    except Exception:
        cap = 64 * 1024 * 1024  # v7x per-TC VMEM: the smallest current gen
    return max(32 * 1024 * 1024, (cap * 3) // 4)


def _hat_math(x):
    # hat(x) = max(0, min(x, 2 - x))
    dtype = x.dtype
    if jnp.issubdtype(dtype, jnp.unsignedinteger):
        xi = x.astype(jnp.int32)  # avoid unsigned wraparound in (2 - x)
        y = jnp.maximum(0, jnp.minimum(xi, 2 - xi))
        return y.astype(dtype)
    zero = jnp.asarray(0, dtype=dtype)
    two = jnp.asarray(2, dtype=dtype)
    return jnp.maximum(zero, jnp.minimum(x, two - x))


def _hat_kernel(x_ref, o_ref):
    o_ref[...] = _hat_math(x_ref[...])


def hat(x: jax.Array, *, tile_bytes: int = 4 * 1024 * 1024,
        min_steps: int = 8, in_place: bool = False) -> jax.Array:
    """Apply the hat activation elementwise.  Accepts any shape / dtype."""
    orig_shape = x.shape
    dtype = x.dtype
    n = x.size
    itemsize = jnp.dtype(dtype).itemsize
    min_steps = max(1, int(min_steps))

    # Empty / tiny inputs: skip the kernel entirely (fused XLA is faster).
    if n * itemsize < _MIN_PALLAS_BYTES:
        return _hat_math(x)

    # dtype-aware packed sublane multiple: f32 -> 8, bf16 -> 16, int8/fp8 -> 32.
    sublane = max(8, 32 // itemsize)
    flat = x.reshape(-1)

    if n % _LANES == 0:
        # ---- common case: lane-aligned -> 2-D (rows, 128) view (free bitcast).
        n_rows = n // _LANES
        row_bytes = _LANES * itemsize
        tile_rows = max(sublane, (tile_bytes // row_bytes) // sublane * sublane)
        # Guarantee >= min_steps grid steps when the array has the rows
        # (>= 4 blocks per TC on v7x's 2-core megacore).
        tile_rows = min(tile_rows, max(sublane, _round_up(pl.cdiv(n_rows, min_steps), sublane)))
        tile_rows = min(tile_rows, _round_up(n_rows, sublane))

        arr = flat.reshape(n_rows, _LANES)
        grid = (pl.cdiv(n_rows, tile_rows),)         # last block may be partial
        block = (tile_rows, _LANES)
        out_shape = jax.ShapeDtypeStruct((n_rows, _LANES), dtype)
        index_map = lambda i: (i, 0)
        tile_elems = tile_rows * _LANES
    else:
        # ---- rare case: not a multiple of 128.  Run the kernel over the flat
        # 1-D array with 128-multiple blocks; Pallas masks the partial last
        # block (hat is elementwise, so padded garbage lanes never matter).
        chunk = sublane * _LANES
        tile_elems = max(chunk, (tile_bytes // itemsize) // chunk * chunk)
        tile_elems = min(tile_elems, max(chunk, _round_up(pl.cdiv(n, min_steps), chunk)))
        tile_elems = min(tile_elems, _round_up(n, chunk))

        arr = flat
        grid = (pl.cdiv(n, tile_elems),)
        block = (tile_elems,)
        out_shape = jax.ShapeDtypeStruct((n,), dtype)
        index_map = lambda i: (i,)

    # VMEM: (in + out) x double-buffered tiles + margin, capped per generation.
    tile_actual_bytes = tile_elems * itemsize
    vmem_limit = min(_vmem_budget_bytes(),
                     max(32 * 1024 * 1024, 4 * tile_actual_bytes + (4 << 20)))

    out = pl.pallas_call(
        _hat_kernel,
        out_shape=out_shape,
        grid_spec=pltpu.PrefetchScalarGridSpec(
            num_scalar_prefetch=0,
            grid=grid,
            in_specs=[pl.BlockSpec(block, index_map)],
            out_specs=pl.BlockSpec(block, index_map),
        ),
        compiler_params=pltpu.CompilerParams(
            dimension_semantics=("parallel",),
            vmem_limit_bytes=int(vmem_limit),
        ),
        cost_estimate=pl.CostEstimate(
            flops=3 * n,
            transcendentals=0,
            bytes_accessed=2 * n * itemsize,
        ),
        input_output_aliases=({0: 0} if in_place else {}),
    )(arr)

    return out.reshape(orig_shape)


def hat_reference(x: jax.Array) -> jax.Array:
    """Pure-JAX reference using the same relu composition as the PyTorch module."""
    relu = lambda v: jnp.maximum(v, 0)
    return relu(x) - 2 * relu(x - 1) + relu(x - 2)


if __name__ == "__main__":
    key = jax.random.PRNGKey(0)
    k0, k1, k2, k3 = jax.random.split(key, 4)

    # 1) Small NCHW input (module-typical shape) -> fused jnp fast path.
    x_small = jax.random.normal(k0, (2, 4, 16, 16), dtype=jnp.float32) * 2.0
    out_small = jax.block_until_ready(hat(x_small))
    assert out_small.shape == x_small.shape and out_small.dtype == x_small.dtype
    assert jnp.allclose(out_small, hat_reference(x_small), atol=1e-6), "mismatch (fast path)"

    # 2) Larger lane-aligned input -> 2-D Pallas path with a multi-step grid.
    x_big = jax.random.normal(k1, (4, 16, 64, 64), dtype=jnp.float32) * 3.0
    out_big = jax.block_until_ready(hat(x_big))
    assert jnp.allclose(out_big, hat_reference(x_big), atol=1e-6), "mismatch (aligned)"

    # bf16 variant (different sublane packing).
    x_bf16 = (jax.random.normal(k2, (2, 8, 64, 64), dtype=jnp.float32) * 3.0).astype(jnp.bfloat16)
    out_bf16 = jax.block_until_ready(hat(x_bf16))
    assert out_bf16.dtype == jnp.bfloat16
    assert jnp.allclose(out_bf16.astype(jnp.float32),
                        hat_reference(x_bf16.astype(jnp.float32)), atol=2e-2), "mismatch (bf16)"

    # 3) Non-multiple-of-128 element count -> 1-D masked-last-block path
    #    (no pad / slice HBM round trips).
    x_odd = jax.random.normal(k3, (3, 5, 9973), dtype=jnp.float32) * 3.0
    out_odd = jax.block_until_ready(hat(x_odd))
    assert out_odd.shape == x_odd.shape
    assert jnp.allclose(out_odd, hat_reference(x_odd), atol=1e-6), "mismatch (unaligned)"

    # 4) Aliased (in-place) variant with buffer donation at the jit boundary.
    x_alias = jax.random.normal(jax.random.PRNGKey(7), (1, 8, 128, 128), dtype=jnp.float32) * 2.0
    ref_alias = hat_reference(x_alias)
    hat_inplace = jax.jit(lambda a: hat(a, in_place=True), donate_argnums=0)
    out_alias = jax.block_until_ready(hat_inplace(x_alias))
    assert jnp.allclose(out_alias, ref_alias, atol=1e-6), "mismatch (in-place)"

    print("KERNEL_OK")
</pallas_src>

<mosaic_0001>
module attributes {stable_mosaic.version = 11 : i64} {
  func.func @_hat_kernel(%arg0: i32, %arg1: memref<256x128xf32, #tpu.memory_space<vmem>>, %arg2: memref<256x128xf32, #tpu.memory_space<vmem>>) attributes {dimension_semantics = [#tpu.dimension_semantics<parallel>], iteration_bounds = array<i64: 8>, scalar_prefetch = 0 : i64, scratch_operands = 0 : i64, tpu.core_type = #tpu.core_type<tc>, window_params = [{transform_indices = @transform_0, window_bounds = array<i64: 256, 128>}, {transform_indices = @transform_1, window_bounds = array<i64: 256, 128>}]} {
    %c0 = arith.constant 0 : index
    %c0_0 = arith.constant 0 : index
    %0 = vector.load %arg1[%c0, %c0_0] : memref<256x128xf32, #tpu.memory_space<vmem>>, vector<256x128xf32>
    %cst = arith.constant 2.000000e+00 : f32
    %1 = vector.broadcast %cst : f32 to vector<256x128xf32>
    %2 = arith.subf %1, %0 : vector<256x128xf32>
    %3 = arith.minimumf %0, %2 : vector<256x128xf32>
    %cst_1 = arith.constant 0.000000e+00 : f32
    %4 = vector.broadcast %cst_1 : f32 to vector<256x128xf32>
    %5 = arith.maximumf %4, %3 : vector<256x128xf32>
    %c0_2 = arith.constant 0 : index
    %c0_3 = arith.constant 0 : index
    %6 = vector.load %arg2[%c0_2, %c0_3] : memref<256x128xf32, #tpu.memory_space<vmem>>, vector<256x128xf32>
    tpu.vector_store %arg2[%c0_2, %c0_3], %5 {strides = array<i32>} : memref<256x128xf32, #tpu.memory_space<vmem>>, vector<256x128xf32>,
    return
  }
  func.func @transform_0(%arg0: i32) -> (i32, i32) {
    %c0_i32 = arith.constant 0 : i32
    %c0_i32_0 = arith.constant 0 : i32
    return %arg0, %c0_i32 : i32, i32
  }
  func.func @transform_1(%arg0: i32) -> (i32, i32) {
    %c0_i32 = arith.constant 0 : i32
    %c0_i32_0 = arith.constant 0 : i32
    return %arg0, %c0_i32 : i32, i32
  }
}

</mosaic_0001>

<llo_original>
// kernel: tpu_custom_call.1
$region0: #{tpu_custom_call.1}
  #allocation0 [shape = 'u32[]', space=smem, size = 0x4, offset = 0x4, fixed_abs, tag = 'smem constant byte address 0x4 - core index']
  #allocation1 [shape = 'u32[144,128]{1,0:T(1,128)}', space=vmem, size = 0x12000, scoped, tag = 'internal scratch']
  %s0 = inlined_call_operand.hbm [shape: f32[2048,128], index: 0, kind: input, shape index: {}]
  %s1 = inlined_call_operand.hbm [shape: f32[2048,128], index: 1, kind: output, shape index: {}]
  %s2 = sld [smem:[#allocation0]]
  $region41: #{tpu_custom_call.1} parent=0
    _
  %s4 = ssub.s32 1, %s2
  %s5 = scalar_select 0, %s4, %s2
  $region1: #{tpu_custom_call.1} parent=0
    #allocation2 [shape = 'u8[262144]{0}', space=vmem, size = 0x40000, scoped, tag = 'input window, operand 0']
    #allocation3 [shape = 's32[2]{0}', space=sflag, size = 0x8, scoped, tag = 'scoped memory for tpu_custom_call.1']
    #allocation4 [shape = 's32[2]{0}', space=sflag, size = 0x8, scoped, tag = 'scoped memory for tpu_custom_call.1']
    #allocation5 [shape = 'u8[262144]{0}', space=vmem, size = 0x40000, scoped, tag = 'output window, operand 0']
    %6 = vsyncpa [#allocation3], 0
    %s7 = scalar_lea.sflag [#allocation3], 1
    %8 = vsyncpa %s7, 0
    %9 = vsyncpa [#allocation4], 0
    %s10 = scalar_lea.sflag [#allocation4], 1
    %11 = vsyncpa %s10, 0
    loop: start=0, step=1, limit=10
    $region2: #{tpu_custom_call.1} parent=1 // loop_pre_header
      _
    $region3: #{tpu_custom_call.1} parent=1 // loop_header
      %s13 = sphi 0, %s17
      %p14 = scmp.ge.s32.totalorder %s13, 10
      %s23 = sphi 0, %s25
      %s26 = sphi 0, %s23
      %s27 = sphi 0, %s26
      %s43 = sphi 0, %s27
      %s49 = sphi 0, %s51
      %s52 = sphi 0, %s49
      %s53 = sphi 0, %s52
      %s69 = sphi 0, %s53
    $region4: #{tpu_custom_call.1} parent=1 // loop_header_branch
      %16 = sbr.rel (%p14) target = $region8
    $region5: #{tpu_custom_call.1} parent=1 // loop_body
      %s18 = ssub.s32 %s13, 1
      %s19 = ssub.s32 %s13, 2
      %s20 = sadd.s32 %s13, 1
      %s21 = ssub.s32 %s13, %s20
      %p22 = scmp.eq.s32.totalorder %s21, 0
      %s24 = sadd.s32 %s23, 1
      %s25 = scalar_select %p22, %s23, %s24
      %p28 = pneg %p22
      %p29 = scmp.eq.s32.totalorder %s13, 7
      %p30 = por %p28, %p29
      %p31 = scmp.ne.s32.totalorder %s23, %s26
      %p32 = scmp.eq.s32.totalorder %s13, 0
      %p33 = por %p31, %p32
      %p34 = scmp.ne.s32.totalorder %s23, %s26
      %p35 = scmp.eq.s32.totalorder %s18, 7
      %p36 = por %p34, %p35
      %p37 = scmp.ne.s32.totalorder %s26, %s27
      %p38 = scmp.eq.s32.totalorder %s18, 0
      %p39 = por %p37, %p38
      %p40 = scmp.ne.s32.totalorder %s26, %s27
      %p41 = scmp.eq.s32.totalorder %s19, 7
      %p42 = por %p40, %p41
      %p44 = scmp.ne.s32.totalorder %s27, %s43
      %p45 = scmp.eq.s32.totalorder %s19, 0
      %p46 = por %p44, %p45
      %s47 = ssub.s32 %s13, %s20
      %p48 = scmp.eq.s32.totalorder %s47, 0
      %s50 = sadd.s32 %s49, 1
      %s51 = scalar_select %p48, %s49, %s50
      %p54 = pneg %p48
      %p55 = scmp.eq.s32.totalorder %s13, 7
      %p56 = por %p54, %p55
      %p57 = scmp.ne.s32.totalorder %s49, %s52
      %p58 = scmp.eq.s32.totalorder %s13, 0
      %p59 = por %p57, %p58
      %p60 = scmp.ne.s32.totalorder %s49, %s52
      %p61 = scmp.eq.s32.totalorder %s18, 7
      %p62 = por %p60, %p61
      %p63 = scmp.ne.s32.totalorder %s52, %s53
      %p64 = scmp.eq.s32.totalorder %s18, 0
      %p65 = por %p63, %p64
      %p66 = scmp.ne.s32.totalorder %s52, %s53
      %p67 = scmp.eq.s32.totalorder %s19, 7
      %p68 = por %p66, %p67
      %p70 = scmp.ne.s32.totalorder %s53, %s69
      %p71 = scmp.eq.s32.totalorder %s19, 0
      %p72 = por %p70, %p71
      %p73 = scmp.le.s32.totalorder 1, %s13
      %p74 = scmp.lt.s32.totalorder %s13, 9
      %p75 = pnand %p73, %p74
      %p76 = pneg %p75
      // Predicated region
      $region9: #{tpu_custom_call.1} parent=5 // pred_check
        _
      $region10: #{tpu_custom_call.1} parent=5 // pred_check_branch
        %78 = sbr.rel (%p75) target = $region12
      $region11: #{tpu_custom_call.1} parent=5 // pred_region
        %s79 = ssub.s32 %s13, 1
      $region12: #{tpu_custom_call.1} parent=5 // pred_fallthru
        _
      %p80 = scmp.lt.s32.totalorder %s13, 8
      // Predicated region
      $region13: #{tpu_custom_call.1} parent=5 // pred_check
        %p81 = pneg %p80
      $region14: #{tpu_custom_call.1} parent=5 // pred_check_branch
        %83 = sbr.rel (%p81) target = $region16
      $region15: #{tpu_custom_call.1} parent=5 // pred_region
        // Predicated region
        $region17: #{tpu_custom_call.1} parent=15 // pred_check
          %p84 = pneg %p33
        $region18: #{tpu_custom_call.1} parent=15 // pred_check_branch
          %86 = sbr.rel (%p84) target = $region20
        $region19: #{tpu_custom_call.1} parent=15 // pred_region
          %s87 = sand.u32 %s23, 1
          %s88 = scalar_lea.sflag [#allocation3], %s87
          %s89 = sand.u32 %s23, 1
          %s90 = smul.addr %s89, 256
          %s91 = scalar_lea.vmem [#allocation2], %s90
          %s92 = smul.u32 32, %s13
          %s94 = ssub.s32 4096, 4096
          %95 = vsyncadd %s88, %s94
          %s96 = smul.addr %s92, 128
          %s97 = scalar_lea.hbm %s0, %s96
          %s98 = sshll.u32 %s91, 4
          %s99 = int_to_ptr.vmem [resolvable:$true] %s98
          %104 = dma.hbm_to_vmem [thread:$0]  %s97, 4096, %s99, %s88, 128, 128, 8
        $region20: #{tpu_custom_call.1} parent=15 // pred_fallthru
          _
      $region16: #{tpu_custom_call.1} parent=5 // pred_fallthru
        _
      %p105 = scmp.le.s32.totalorder 1, %s13
      %p106 = scmp.lt.s32.totalorder %s13, 9
      %p107 = pnand %p105, %p106
      %p108 = pneg %p107
      // Predicated region
      $region21: #{tpu_custom_call.1} parent=5 // pred_check
        _
      $region22: #{tpu_custom_call.1} parent=5 // pred_check_branch
        %110 = sbr.rel (%p107) target = $region24
      $region23: #{tpu_custom_call.1} parent=5 // pred_region
        %s111 = ssub.s32 %s13, 1
        %s112 = sand.u32 %s26, 1
        %s113 = scalar_lea.sflag [#allocation3], %s112
        %s114 = sand.u32 %s26, 1
        %s115 = smul.addr %s114, 256
        %s116 = scalar_lea.vmem [#allocation2], %s115
        // Predicated region
        $region25: #{tpu_custom_call.1} parent=23 // pred_check
          %p117 = pneg %p39
        $region26: #{tpu_custom_call.1} parent=23 // pred_check_branch
          %119 = sbr.rel (%p117) target = $region28
        $region27: #{tpu_custom_call.1} parent=23 // pred_region
          %120 = dma.done %s113, 4096
        $region28: #{tpu_custom_call.1} parent=23 // pred_fallthru
          _
        %s121 = sand.u32 %s26, 1
        %s122 = scalar_lea.sflag [#allocation3], %s121
        %s123 = sand.u32 %s26, 1
        %s124 = smul.addr %s123, 256
        %s125 = scalar_lea.vmem [#allocation2], %s124
        %p126 = pneg %p39
        %p127 = pneg %p36
        %p128 = pneg %p65
        %p129 = pneg %p62
        %s130 = sand.u32 %s52, 1
        %s131 = scalar_lea.sflag [#allocation4], %s130
        %s132 = sand.u32 %s52, 1
        %s133 = smul.addr %s132, 256
        %s134 = scalar_lea.vmem [#allocation5], %s133
        %s135 = smul.u32 32, %s18
        %s136 = smul.u32 32, %s18
        %v137 = vld [vmem:[%s116] sm:$0xff]
        %v138 = vld [vmem:[%s116 + $0x8] sm:$0xff]
        %v139 = vld [vmem:[%s116 + $0x10] sm:$0xff]
        %v140 = vld [vmem:[%s116 + $0x18] sm:$0xff]
        %v141 = vld [vmem:[%s116 + $0x20] sm:$0xff]
        %v142 = vld [vmem:[%s116 + $0x28] sm:$0xff]
        %v143 = vld [vmem:[%s116 + $0x30] sm:$0xff]
        %v144 = vld [vmem:[%s116 + $0x38] sm:$0xff]
        %v145 = vld [vmem:[%s116 + $0x40] sm:$0xff]
        %v146 = vld [vmem:[%s116 + $0x48] sm:$0xff]
        %v147 = vld [vmem:[%s116 + $0x50] sm:$0xff]
        %v148 = vld [vmem:[%s116 + $0x58] sm:$0xff]
        %v149 = vld [vmem:[%s116 + $0x60] sm:$0xff]
        %v150 = vld [vmem:[%s116 + $0x68] sm:$0xff]
        %v151 = vld [vmem:[%s116 + $0x70] sm:$0xff]
        %v152 = vld [vmem:[%s116 + $0x78] sm:$0xff]
        %v153 = vld [vmem:[%s116 + $0x80] sm:$0xff]
        %v154 = vld [vmem:[%s116 + $0x88] sm:$0xff]
        %v155 = vld [vmem:[%s116 + $0x90] sm:$0xff]
        %v156 = vld [vmem:[%s116 + $0x98] sm:$0xff]
        %v157 = vld [vmem:[%s116 + $0xa0] sm:$0xff]
        %v158 = vld [vmem:[%s116 + $0xa8] sm:$0xff]
        %v159 = vld [vmem:[%s116 + $0xb0] sm:$0xff]
        %v160 = vld [vmem:[%s116 + $0xb8] sm:$0xff]
        %v161 = vld [vmem:[%s116 + $0xc0] sm:$0xff]
        %v162 = vld [vmem:[%s116 + $0xc8] sm:$0xff]
        %v163 = vld [vmem:[%s116 + $0xd0] sm:$0xff]
        %v164 = vld [vmem:[%s116 + $0xd8] sm:$0xff]
        %v165 = vld [vmem:[%s116 + $0xe0] sm:$0xff]
        %v166 = vld [vmem:[%s116 + $0xe8] sm:$0xff]
        %v167 = vld [vmem:[%s116 + $0xf0] sm:$0xff]
        %v168 = vld [vmem:[%s116 + $0xf8] sm:$0xff]
        %v169 = vsub.f32 2.0, %v137
        %v170 = vsub.f32 2.0, %v138
        %v171 = vsub.f32 2.0, %v139
        %v172 = vsub.f32 2.0, %v140
        %v173 = vsub.f32 2.0, %v141
        %v174 = vsub.f32 2.0, %v142
        %v175 = vsub.f32 2.0, %v143
        %v176 = vsub.f32 2.0, %v144
        %v177 = vsub.f32 2.0, %v145
        %v178 = vsub.f32 2.0, %v146
        %v179 = vsub.f32 2.0, %v147
        %v180 = vsub.f32 2.0, %v148
        %v181 = vsub.f32 2.0, %v149
        %v182 = vsub.f32 2.0, %v150
        %v183 = vsub.f32 2.0, %v151
        %v184 = vsub.f32 2.0, %v152
        %v185 = vsub.f32 2.0, %v153
        %v186 = vsub.f32 2.0, %v154
        %v187 = vsub.f32 2.0, %v155
        %v188 = vsub.f32 2.0, %v156
        %v189 = vsub.f32 2.0, %v157
        %v190 = vsub.f32 2.0, %v158
        %v191 = vsub.f32 2.0, %v159
        %v192 = vsub.f32 2.0, %v160
        %v193 = vsub.f32 2.0, %v161
        %v194 = vsub.f32 2.0, %v162
        %v195 = vsub.f32 2.0, %v163
        %v196 = vsub.f32 2.0, %v164
        %v197 = vsub.f32 2.0, %v165
        %v198 = vsub.f32 2.0, %v166
        %v199 = vsub.f32 2.0, %v167
        %v200 = vsub.f32 2.0, %v168
        %v201 = vmin.f32 %v137, %v169
        %v202 = vmin.f32 %v138, %v170
        %v203 = vmin.f32 %v139, %v171
        %v204 = vmin.f32 %v140, %v172
        %v205 = vmin.f32 %v141, %v173
        %v206 = vmin.f32 %v142, %v174
        %v207 = vmin.f32 %v143, %v175
        %v208 = vmin.f32 %v144, %v176
        %v209 = vmin.f32 %v145, %v177
        %v210 = vmin.f32 %v146, %v178
        %v211 = vmin.f32 %v147, %v179
        %v212 = vmin.f32 %v148, %v180
        %v213 = vmin.f32 %v149, %v181
        %v214 = vmin.f32 %v150, %v182
        %v215 = vmin.f32 %v151, %v183
        %v216 = vmin.f32 %v152, %v184
        %v217 = vmin.f32 %v153, %v185
        %v218 = vmin.f32 %v154, %v186
        %v219 = vmin.f32 %v155, %v187
        %v220 = vmin.f32 %v156, %v188
        %v221 = vmin.f32 %v157, %v189
        %v222 = vmin.f32 %v158, %v190
        %v223 = vmin.f32 %v159, %v191
        %v224 = vmin.f32 %v160, %v192
        %v225 = vmin.f32 %v161, %v193
        %v226 = vmin.f32 %v162, %v194
        %v227 = vmin.f32 %v163, %v195
        %v228 = vmin.f32 %v164, %v196
        %v229 = vmin.f32 %v165, %v197
        %v230 = vmin.f32 %v166, %v198
        %v231 = vmin.f32 %v167, %v199
        %v232 = vmin.f32 %v168, %v200
        %v233 = vmax.f32 %v201, 0.0
        %v234 = vmax.f32 %v202, 0.0
        %v235 = vmax.f32 %v203, 0.0
        %v236 = vmax.f32 %v204, 0.0
        %v237 = vmax.f32 %v205, 0.0
        %v238 = vmax.f32 %v206, 0.0
        %v239 = vmax.f32 %v207, 0.0
        %v240 = vmax.f32 %v208, 0.0
        %v241 = vmax.f32 %v209, 0.0
        %v242 = vmax.f32 %v210, 0.0
        %v243 = vmax.f32 %v211, 0.0
        %v244 = vmax.f32 %v212, 0.0
        %v245 = vmax.f32 %v213, 0.0
        %v246 = vmax.f32 %v214, 0.0
        %v247 = vmax.f32 %v215, 0.0
        %v248 = vmax.f32 %v216, 0.0
        %v249 = vmax.f32 %v217, 0.0
        %v250 = vmax.f32 %v218, 0.0
        %v251 = vmax.f32 %v219, 0.0
        %v252 = vmax.f32 %v220, 0.0
        %v253 = vmax.f32 %v221, 0.0
        %v254 = vmax.f32 %v222, 0.0
        %v255 = vmax.f32 %v223, 0.0
        %v256 = vmax.f32 %v224, 0.0
        %v257 = vmax.f32 %v225, 0.0
        %v258 = vmax.f32 %v226, 0.0
        %v259 = vmax.f32 %v227, 0.0
        %v260 = vmax.f32 %v228, 0.0
        %v261 = vmax.f32 %v229, 0.0
        %v262 = vmax.f32 %v230, 0.0
        %v263 = vmax.f32 %v231, 0.0
        %v264 = vmax.f32 %v232, 0.0
        %265 = vst [vmem:[%s134] sm:$0xff] %v233
        %266 = vst [vmem:[%s134 + $0x8] sm:$0xff] %v234
        %267 = vst [vmem:[%s134 + $0x10] sm:$0xff] %v235
        %268 = vst [vmem:[%s134 + $0x18] sm:$0xff] %v236
        %269 = vst [vmem:[%s134 + $0x20] sm:$0xff] %v237
        %270 = vst [vmem:[%s134 + $0x28] sm:$0xff] %v238
        %271 = vst [vmem:[%s134 + $0x30] sm:$0xff] %v239
        %272 = vst [vmem:[%s134 + $0x38] sm:$0xff] %v240
        %273 = vst [vmem:[%s134 + $0x40] sm:$0xff] %v241
        %274 = vst [vmem:[%s134 + $0x48] sm:$0xff] %v242
        %275 = vst [vmem:[%s134 + $0x50] sm:$0xff] %v243
        %276 = vst [vmem:[%s134 + $0x58] sm:$0xff] %v244
        %277 = vst [vmem:[%s134 + $0x60] sm:$0xff] %v245
        %278 = vst [vmem:[%s134 + $0x68] sm:$0xff] %v246
        %279 = vst [vmem:[%s134 + $0x70] sm:$0xff] %v247
        %280 = vst [vmem:[%s134 + $0x78] sm:$0xff] %v248
        %281 = vst [vmem:[%s134 + $0x80] sm:$0xff] %v249
        %282 = vst [vmem:[%s134 + $0x88] sm:$0xff] %v250
        %283 = vst [vmem:[%s134 + $0x90] sm:$0xff] %v251
        %284 = vst [vmem:[%s134 + $0x98] sm:$0xff] %v252
        %285 = vst [vmem:[%s134 + $0xa0] sm:$0xff] %v253
        %286 = vst [vmem:[%s134 + $0xa8] sm:$0xff] %v254
        %287 = vst [vmem:[%s134 + $0xb0] sm:$0xff] %v255
        %288 = vst [vmem:[%s134 + $0xb8] sm:$0xff] %v256
        %289 = vst [vmem:[%s134 + $0xc0] sm:$0xff] %v257
        %290 = vst [vmem:[%s134 + $0xc8] sm:$0xff] %v258
        %291 = vst [vmem:[%s134 + $0xd0] sm:$0xff] %v259
        %292 = vst [vmem:[%s134 + $0xd8] sm:$0xff] %v260
        %293 = vst [vmem:[%s134 + $0xe0] sm:$0xff] %v261
        %294 = vst [vmem:[%s134 + $0xe8] sm:$0xff] %v262
        %295 = vst [vmem:[%s134 + $0xf0] sm:$0xff] %v263
        %296 = vst [vmem:[%s134 + $0xf8] sm:$0xff] %v264
        %s297 = sand.u32 %s52, 1
        %s298 = scalar_lea.sflag [#allocation4], %s297
        %s299 = sand.u32 %s52, 1
        %s300 = smul.addr %s299, 256
        %s301 = scalar_lea.vmem [#allocation5], %s300
        // Predicated region
        $region29: #{tpu_custom_call.1} parent=23 // pred_check
          %p302 = pneg %p62
        $region30: #{tpu_custom_call.1} parent=23 // pred_check_branch
          %304 = sbr.rel (%p302) target = $region32
        $region31: #{tpu_custom_call.1} parent=23 // pred_region
          %s305 = smul.u32 32, %s18
          %s307 = ssub.s32 4096, 4096
          %308 = vsyncadd %s298, %s307
          %s309 = smul.addr %s305, 128
          %s310 = scalar_lea.hbm %s1, %s309
          %s311 = sshll.u32 %s301, 4
          %s312 = int_to_ptr.vmem [resolvable:$true] %s311
          %317 = dma.vmem_to_hbm [thread:$0]  %s312, 4096, %s310, %s298, 128, 128, 8
        $region32: #{tpu_custom_call.1} parent=23 // pred_fallthru
          _
      $region24: #{tpu_custom_call.1} parent=5 // pred_fallthru
        _
      %p318 = scmp.le.s32.totalorder 2, %s13
      // Predicated region
      $region33: #{tpu_custom_call.1} parent=5 // pred_check
        %p319 = pneg %p318
      $region34: #{tpu_custom_call.1} parent=5 // pred_check_branch
        %321 = sbr.rel (%p319) target = $region36
      $region35: #{tpu_custom_call.1} parent=5 // pred_region
        %s322 = ssub.s32 %s13, 2
        // Predicated region
        $region37: #{tpu_custom_call.1} parent=35 // pred_check
          %p323 = pneg %p68
        $region38: #{tpu_custom_call.1} parent=35 // pred_check_branch
          %325 = sbr.rel (%p323) target = $region40
        $region39: #{tpu_custom_call.1} parent=35 // pred_region
          %s326 = sand.u32 %s53, 1
          %s327 = scalar_lea.sflag [#allocation4], %s326
          %s328 = sand.u32 %s53, 1
          %s329 = smul.addr %s328, 256
          %s330 = scalar_lea.vmem [#allocation5], %s329
          %331 = dma.done %s327, 4096
        $region40: #{tpu_custom_call.1} parent=35 // pred_fallthru
          _
      $region36: #{tpu_custom_call.1} parent=5 // pred_fallthru
        _
    $region6: #{tpu_custom_call.1} parent=1 // loop_footer
      %s17 = sadd.s32 1, %s13
    $region7: #{tpu_custom_call.1} parent=1 // loop_footer_branch
      %12 = sbr.rel target = $region3
    $region8: #{tpu_custom_call.1} parent=1 // loop_exit
      _
    %332 = vsyncpa [#allocation3], 1
    %s333 = scalar_lea.sflag [#allocation3], 1
    %334 = vsyncpa %s333, 1
    %335 = vsyncpa [#allocation4], 1
    %s336 = scalar_lea.sflag [#allocation4], 1
    %337 = vsyncpa %s336, 1

</llo_original>
